<compile_context>
chip_gen: v7x
topology: tpu7x:2x2x1
jax: 0.10.0
libtpu: 0.0.40
codegen_flags: <defaults>
</compile_context>

<pallas_src>
import functools

import jax
import jax.numpy as jnp
from jax.experimental import pallas as pl
from jax.experimental.pallas import tpu as pltpu


def shifted_softplus(x):
    # ln(0.5) + softplus(x) = ln(0.5 * e^x + 0.5), numerically stable form.
    return jax.nn.softplus(x) - jnp.log(2.0).astype(x.dtype)


def residual_kernel(x_ref, w1t_ref, b1_ref, w2t_ref, b2_ref, o_ref):
    """One tile of rows: full residual block computed in VMEM.

    x tile: (TN, F) in the input dtype.  Weights are resident bf16 (F, F),
    biases are resident f32 (1, F).  Matmuls run on the MXU in bf16 with
    f32 accumulation; elementwise math and the residual add stay in f32.
    """
    xf = x_ref[...].astype(jnp.float32)                      # hoisted cast, reused

    a1 = shifted_softplus(xf).astype(jnp.bfloat16)
    y = jnp.dot(a1, w1t_ref[...],
                preferred_element_type=jnp.float32) + b1_ref[...]

    a2 = shifted_softplus(y).astype(jnp.bfloat16)
    y = jnp.dot(a2, w2t_ref[...],
                preferred_element_type=jnp.float32) + b2_ref[...]

    o_ref[...] = (xf + y).astype(o_ref.dtype)


def _round_up(a, b):
    return ((a + b - 1) // b) * b


@functools.partial(jax.jit, static_argnames=("tile_n",))
def residual_forward(x, w1, b1, w2, b2, *, tile_n=256):
    """x: [N, F]. w1, w2: [F, F] (nn.Linear layout). b1, b2: [F]."""
    N, F = x.shape

    # Lane-dense feature dim (multiple of 128) and sublane-aligned row tile.
    F_pad = _round_up(max(F, 128), 128)
    tn = max(8, min(_round_up(tile_n, 8), _round_up(N, 8)))
    N_pad = _round_up(N, tn)

    # Zero padding is exact: shifted_softplus(0) == 0 and padded weight
    # rows/cols and bias entries are zero, so padded lanes/rows contribute
    # nothing to the real outputs (and are sliced off below).
    x_p = jnp.pad(x, ((0, N_pad - N), (0, F_pad - F)))
    w1t = jnp.pad(w1.T, ((0, F_pad - F), (0, F_pad - F))).astype(jnp.bfloat16)
    w2t = jnp.pad(w2.T, ((0, F_pad - F), (0, F_pad - F))).astype(jnp.bfloat16)
    b1_2d = jnp.pad(b1, (0, F_pad - F)).reshape(1, F_pad).astype(jnp.float32)
    b2_2d = jnp.pad(b2, (0, F_pad - F)).reshape(1, F_pad).astype(jnp.float32)

    grid = (N_pad // tn,)
    out = pl.pallas_call(
        residual_kernel,
        out_shape=jax.ShapeDtypeStruct((N_pad, F_pad), x.dtype),
        grid_spec=pltpu.PrefetchScalarGridSpec(
            num_scalar_prefetch=0,
            grid=grid,
            in_specs=[
                pl.BlockSpec((tn, F_pad), lambda i: (i, 0)),         # x rows (pipelined)
                pl.BlockSpec((F_pad, F_pad), lambda i: (0, 0)),      # W1^T bf16 (resident)
                pl.BlockSpec((1, F_pad), lambda i: (0, 0)),          # b1
                pl.BlockSpec((F_pad, F_pad), lambda i: (0, 0)),      # W2^T bf16 (resident)
                pl.BlockSpec((1, F_pad), lambda i: (0, 0)),          # b2
            ],
            out_specs=pl.BlockSpec((tn, F_pad), lambda i: (i, 0)),
        ),
        compiler_params=pltpu.CompilerParams(
            dimension_semantics=("parallel",),
            vmem_limit_bytes=64 * 1024 * 1024,
        ),
    )(x_p, w1t, b1_2d, w2t, b2_2d)

    return out[:N, :F]


def init_residual_params(num_features, key, bias=True, zero_init=True):
    """Deterministic init mirroring Residual.reset_parameters."""
    k1, k2 = jax.random.split(key)
    # orthogonal_ for linear1.weight
    a = jax.random.normal(k1, (num_features, num_features), jnp.float32)
    q, r = jnp.linalg.qr(a)
    q = q * jnp.sign(jnp.diag(r))[None, :]
    w1 = q
    if zero_init:
        w2 = jnp.zeros((num_features, num_features), jnp.float32)
    else:
        a2 = jax.random.normal(k2, (num_features, num_features), jnp.float32)
        q2, r2 = jnp.linalg.qr(a2)
        w2 = q2 * jnp.sign(jnp.diag(r2))[None, :]
    b1 = jnp.zeros((num_features,), jnp.float32)
    b2 = jnp.zeros((num_features,), jnp.float32)
    return w1, b1, w2, b2


def residual_ref(x, w1, b1, w2, b2):
    """Pure-JAX f32 reference (matches the PyTorch forward semantics)."""
    y = shifted_softplus(x)
    y = y @ w1.T + b1
    y = shifted_softplus(y)
    y = y @ w2.T + b2
    return x + y


if __name__ == "__main__":
    key = jax.random.PRNGKey(0)
    k_x, k_p = jax.random.split(key)

    N, num_features = 16, 32                          # small synthetic shapes
    x = jax.random.normal(k_x, (N, num_features), jnp.float32)

    # Use zero_init=False so the block does nontrivial compute
    # (zero_init=True would make the output exactly equal to x).
    w1, b1, w2, b2 = init_residual_params(num_features, k_p, zero_init=False)

    out = residual_forward(x, w1, b1, w2, b2)
    out = jax.block_until_ready(out)

    ref = residual_ref(x, w1, b1, w2, b2)
    assert out.shape == (N, num_features)
    assert out.dtype == x.dtype
    # bf16 MXU matmuls with f32 accumulation -> slightly relaxed tolerance
    # vs the pure-f32 reference.
    assert jnp.allclose(out, ref, atol=3e-2, rtol=3e-2), "mismatch vs reference"

    print("KERNEL_OK")
</pallas_src>

<mosaic_0001>
module attributes {stable_mosaic.version = 11 : i64} {
  func.func @residual_kernel(%arg0: i32, %arg1: memref<16x128xf32, #tpu.memory_space<vmem>>, %arg2: memref<128x128xbf16, #tpu.memory_space<vmem>>, %arg3: memref<1x128xf32, #tpu.memory_space<vmem>>, %arg4: memref<128x128xbf16, #tpu.memory_space<vmem>>, %arg5: memref<1x128xf32, #tpu.memory_space<vmem>>, %arg6: memref<16x128xf32, #tpu.memory_space<vmem>>) attributes {dimension_semantics = [#tpu.dimension_semantics<parallel>], iteration_bounds = array<i64: 1>, scalar_prefetch = 0 : i64, scratch_operands = 0 : i64, tpu.core_type = #tpu.core_type<tc>, window_params = [{transform_indices = @transform_0, window_bounds = array<i64: 16, 128>}, {pipeline_mode = #tpu.pipeline_mode<synchronous>, transform_indices = @transform_1, window_bounds = array<i64: 128, 128>}, {pipeline_mode = #tpu.pipeline_mode<synchronous>, transform_indices = @transform_2, window_bounds = array<i64: 1, 128>}, {pipeline_mode = #tpu.pipeline_mode<synchronous>, transform_indices = @transform_3, window_bounds = array<i64: 128, 128>}, {pipeline_mode = #tpu.pipeline_mode<synchronous>, transform_indices = @transform_4, window_bounds = array<i64: 1, 128>}, {transform_indices = @transform_5, window_bounds = array<i64: 16, 128>}]} {
    %c0 = arith.constant 0 : index
    %c0_0 = arith.constant 0 : index
    %0 = vector.load %arg1[%c0, %c0_0] : memref<16x128xf32, #tpu.memory_space<vmem>>, vector<16x128xf32>
    %cst = arith.constant 0.000000e+00 : f32
    %1 = vector.broadcast %cst : f32 to vector<16x128xf32>
    %2 = arith.maximumf %0, %1 : vector<16x128xf32>
    %3 = vector.broadcast %cst : f32 to vector<16x128xf32>
    %4 = arith.subf %0, %3 : vector<16x128xf32>
    %5 = arith.cmpf one, %4, %4 : vector<16x128xf32>
    %6 = vector.broadcast %cst : f32 to vector<16x128xf32>
    %7 = arith.addf %0, %6 : vector<16x128xf32>
    %8 = math.absf %4 : vector<16x128xf32>
    %cst_1 = arith.constant 0.000000e+00 : f32
    %9 = vector.broadcast %cst_1 : f32 to vector<16x128xf32>
    %10 = arith.subf %9, %8 : vector<16x128xf32>
    %11 = math.exp %10 : vector<16x128xf32>
    %12 = math.log1p %11 : vector<16x128xf32>
    %13 = arith.addf %2, %12 : vector<16x128xf32>
    %14 = arith.select %5, %7, %13 : vector<16x128xi1>, vector<16x128xf32>
    %cst_2 = arith.constant 2.000000e+00 : f32
    %15 = math.log %cst_2 : f32
    %16 = vector.broadcast %15 : f32 to vector<16x128xf32>
    %17 = arith.subf %14, %16 : vector<16x128xf32>
    %18 = arith.truncf %17 : vector<16x128xf32> to vector<16x128xbf16>
    %c0_3 = arith.constant 0 : index
    %c0_4 = arith.constant 0 : index
    %19 = vector.load %arg2[%c0_3, %c0_4] : memref<128x128xbf16, #tpu.memory_space<vmem>>, vector<128x128xbf16>
    %cst_5 = arith.constant dense<0.000000e+00> : vector<16x128xf32>
    %20 = tpu.matmul %18, %19, %cst_5 {dimension_numbers = #tpu.dot_dimension_numbers<[1], [0], [0], [1], [0, 0, 1, 1], [], []>} : vector<16x128xbf16>, vector<128x128xbf16>, vector<16x128xf32> -> vector<16x128xf32>
    %c0_6 = arith.constant 0 : index
    %c0_7 = arith.constant 0 : index
    %21 = vector.load %arg3[%c0_6, %c0_7] : memref<1x128xf32, #tpu.memory_space<vmem>>, vector<1x128xf32>
    %22 = vector.broadcast %21 : vector<1x128xf32> to vector<16x128xf32>
    %23 = arith.addf %20, %22 : vector<16x128xf32>
    %cst_8 = arith.constant 0.000000e+00 : f32
    %24 = vector.broadcast %cst_8 : f32 to vector<16x128xf32>
    %25 = arith.maximumf %23, %24 : vector<16x128xf32>
    %26 = vector.broadcast %cst_8 : f32 to vector<16x128xf32>
    %27 = arith.subf %23, %26 : vector<16x128xf32>
    %28 = arith.cmpf one, %27, %27 : vector<16x128xf32>
    %29 = vector.broadcast %cst_8 : f32 to vector<16x128xf32>
    %30 = arith.addf %23, %29 : vector<16x128xf32>
    %31 = math.absf %27 : vector<16x128xf32>
    %cst_9 = arith.constant 0.000000e+00 : f32
    %32 = vector.broadcast %cst_9 : f32 to vector<16x128xf32>
    %33 = arith.subf %32, %31 : vector<16x128xf32>
    %34 = math.exp %33 : vector<16x128xf32>
    %35 = math.log1p %34 : vector<16x128xf32>
    %36 = arith.addf %25, %35 : vector<16x128xf32>
    %37 = arith.select %28, %30, %36 : vector<16x128xi1>, vector<16x128xf32>
    %cst_10 = arith.constant 2.000000e+00 : f32
    %38 = math.log %cst_10 : f32
    %39 = vector.broadcast %38 : f32 to vector<16x128xf32>
    %40 = arith.subf %37, %39 : vector<16x128xf32>
    %41 = arith.truncf %40 : vector<16x128xf32> to vector<16x128xbf16>
    %c0_11 = arith.constant 0 : index
    %c0_12 = arith.constant 0 : index
    %42 = vector.load %arg4[%c0_11, %c0_12] : memref<128x128xbf16, #tpu.memory_space<vmem>>, vector<128x128xbf16>
    %cst_13 = arith.constant dense<0.000000e+00> : vector<16x128xf32>
    %43 = tpu.matmul %41, %42, %cst_13 {dimension_numbers = #tpu.dot_dimension_numbers<[1], [0], [0], [1], [0, 0, 1, 1], [], []>} : vector<16x128xbf16>, vector<128x128xbf16>, vector<16x128xf32> -> vector<16x128xf32>
    %c0_14 = arith.constant 0 : index
    %c0_15 = arith.constant 0 : index
    %44 = vector.load %arg5[%c0_14, %c0_15] : memref<1x128xf32, #tpu.memory_space<vmem>>, vector<1x128xf32>
    %45 = vector.broadcast %44 : vector<1x128xf32> to vector<16x128xf32>
    %46 = arith.addf %43, %45 : vector<16x128xf32>
    %47 = arith.addf %0, %46 : vector<16x128xf32>
    %c0_16 = arith.constant 0 : index
    %c0_17 = arith.constant 0 : index
    %48 = vector.load %arg6[%c0_16, %c0_17] : memref<16x128xf32, #tpu.memory_space<vmem>>, vector<16x128xf32>
    tpu.vector_store %arg6[%c0_16, %c0_17], %47 {strides = array<i32>} : memref<16x128xf32, #tpu.memory_space<vmem>>, vector<16x128xf32>,
    return
  }
  func.func @transform_0(%arg0: i32) -> (i32, i32) {
    %c0_i32 = arith.constant 0 : i32
    %c0_i32_0 = arith.constant 0 : i32
    return %arg0, %c0_i32 : i32, i32
  }
  func.func @transform_1(%arg0: i32) -> (i32, i32) {
    %c0_i32 = arith.constant 0 : i32
    %c0_i32_0 = arith.constant 0 : i32
    %c0_i32_1 = arith.constant 0 : i32
    return %c0_i32, %c0_i32_0 : i32, i32
  }
  func.func @transform_2(%arg0: i32) -> (i32, i32) {
    %c0_i32 = arith.constant 0 : i32
    %c0_i32_0 = arith.constant 0 : i32
    %c0_i32_1 = arith.constant 0 : i32
    return %c0_i32, %c0_i32_0 : i32, i32
  }
  func.func @transform_3(%arg0: i32) -> (i32, i32) {
    %c0_i32 = arith.constant 0 : i32
    %c0_i32_0 = arith.constant 0 : i32
    %c0_i32_1 = arith.constant 0 : i32
    return %c0_i32, %c0_i32_0 : i32, i32
  }
  func.func @transform_4(%arg0: i32) -> (i32, i32) {
    %c0_i32 = arith.constant 0 : i32
    %c0_i32_0 = arith.constant 0 : i32
    %c0_i32_1 = arith.constant 0 : i32
    return %c0_i32, %c0_i32_0 : i32, i32
  }
  func.func @transform_5(%arg0: i32) -> (i32, i32) {
    %c0_i32 = arith.constant 0 : i32
    %c0_i32_0 = arith.constant 0 : i32
    return %arg0, %c0_i32 : i32, i32
  }
}

</mosaic_0001>

<llo_original>
// kernel: residual_forward.1
$region0: #{residual_forward.1}
  #allocation0 [shape = 'u32[]', space=smem, size = 0x4, offset = 0x4, fixed_abs, tag = 'smem constant byte address 0x4 - core index']
  #allocation1 [shape = 'u32[144,128]{1,0:T(1,128)}', space=vmem, size = 0x12000, scoped, tag = 'internal scratch']
  %s0 = inlined_call_operand.hbm [shape: f32[16,128], index: 0, kind: input, shape index: {}]
  %s1 = inlined_call_operand.hbm [shape: bf16[128,128], index: 1, kind: input, shape index: {}]
  %s2 = inlined_call_operand.hbm [shape: f32[1,128], index: 2, kind: input, shape index: {}]
  %s3 = inlined_call_operand.hbm [shape: bf16[128,128], index: 3, kind: input, shape index: {}]
  %s4 = inlined_call_operand.hbm [shape: f32[1,128], index: 4, kind: input, shape index: {}]
  %s5 = inlined_call_operand.hbm [shape: f32[16,128], index: 5, kind: output, shape index: {}]
  %s6 = sld [smem:[#allocation0]]
  $region50: #{residual_forward.1} parent=0
    _
  %s8 = ssub.s32 1, %s6
  %s9 = scalar_select 0, %s8, %s6
  $region1: #{residual_forward.1} parent=0
    #allocation2 [shape = 'u8[8192]{0}', space=vmem, size = 0x2000, scoped, tag = 'input window, operand 0, single buffered']
    #allocation3 [shape = 's32[1]{0}', space=sflag, size = 0x4, scoped, tag = 'scoped memory for residual_forward.1']
    #allocation4 [shape = 's32[1]{0}', space=sflag, size = 0x4, scoped, tag = 'scoped memory for residual_forward.1']
    #allocation5 [shape = 'u8[32768]{0}', space=vmem, size = 0x8000, scoped, tag = 'input window, operand 1, single buffered']
    #allocation6 [shape = 's32[1]{0}', space=sflag, size = 0x4, scoped, tag = 'scoped memory for residual_forward.1']
    #allocation7 [shape = 'u8[512]{0}', space=vmem, size = 0x400, scoped, tag = 'input window, operand 2, single buffered']
    #allocation8 [shape = 'u8[32768]{0}', space=vmem, size = 0x8000, scoped, tag = 'input window, operand 3, single buffered']
    #allocation9 [shape = 's32[1]{0}', space=sflag, size = 0x4, scoped, tag = 'scoped memory for residual_forward.1']
    #allocation10 [shape = 'u8[512]{0}', space=vmem, size = 0x400, scoped, tag = 'input window, operand 4, single buffered']
    #allocation11 [shape = 'u8[8192]{0}', space=vmem, size = 0x2000, scoped, tag = 'output window, operand 0, single buffered']
    %10 = vsyncpa [#allocation3], 0
    %11 = vsyncpa [#allocation6], 0
    %12 = vsyncpa [#allocation9], 0
    %13 = vsyncpa [#allocation4], 0
    // Predicated region
    $region2: #{residual_forward.1} parent=1 // pred_check
      _
    $region3: #{residual_forward.1} parent=1 // pred_check_branch
      %15 = sbr.rel (0) target = $region5
    $region4: #{residual_forward.1} parent=1 // pred_region
      %s17 = ssub.s32 256, 256
      %18 = vsyncadd [#allocation3], %s17
      %s19 = sshll.u32 [#allocation2], 4
      %s20 = int_to_ptr.vmem [resolvable:$true] %s19
      %25 = dma.hbm_to_vmem [thread:$0]  %s0, 256, %s20, [#allocation3], 128, 128, 8
    $region5: #{residual_forward.1} parent=1 // pred_fallthru
      _
    // Predicated region
    $region6: #{residual_forward.1} parent=1 // pred_check
      _
    $region7: #{residual_forward.1} parent=1 // pred_check_branch
      %27 = sbr.rel (0) target = $region9
    $region8: #{residual_forward.1} parent=1 // pred_region
      %s29 = ssub.s32 1024, 1024
      %30 = vsyncadd [#allocation6], %s29
      %s31 = sshll.u32 [#allocation5], 4
      %s32 = int_to_ptr.vmem [resolvable:$true] %s31
      %37 = dma.hbm_to_vmem [thread:$0]  %s1, 1024, %s32, [#allocation6], 64, 64, 4
    $region9: #{residual_forward.1} parent=1 // pred_fallthru
      _
    // Predicated region
    $region10: #{residual_forward.1} parent=1 // pred_check
      _
    $region11: #{residual_forward.1} parent=1 // pred_check_branch
      %39 = sbr.rel (0) target = $region13
    $region12: #{residual_forward.1} parent=1 // pred_region
      %s41 = ssub.s32 16, 16
      %42 = vsyncadd [#allocation6], %s41
      %s44 = sshll.u32 [#allocation7], 4
      %s45 = int_to_ptr.vmem [resolvable:$true] %s44
      %47 = dma.hbm_to_vmem [thread:$0]  %s2, 16, %s45, [#allocation6]
    $region13: #{residual_forward.1} parent=1 // pred_fallthru
      _
    // Predicated region
    $region14: #{residual_forward.1} parent=1 // pred_check
      _
    $region15: #{residual_forward.1} parent=1 // pred_check_branch
      %49 = sbr.rel (0) target = $region17
    $region16: #{residual_forward.1} parent=1 // pred_region
      %s51 = ssub.s32 1024, 1024
      %52 = vsyncadd [#allocation9], %s51
      %s53 = sshll.u32 [#allocation8], 4
      %s54 = int_to_ptr.vmem [resolvable:$true] %s53
      %59 = dma.hbm_to_vmem [thread:$0]  %s3, 1024, %s54, [#allocation9], 64, 64, 4
    $region17: #{residual_forward.1} parent=1 // pred_fallthru
      _
    // Predicated region
    $region18: #{residual_forward.1} parent=1 // pred_check
      _
    $region19: #{residual_forward.1} parent=1 // pred_check_branch
      %61 = sbr.rel (0) target = $region21
    $region20: #{residual_forward.1} parent=1 // pred_region
      %s63 = ssub.s32 16, 16
      %64 = vsyncadd [#allocation9], %s63
      %s66 = sshll.u32 [#allocation10], 4
      %s67 = int_to_ptr.vmem [resolvable:$true] %s66
      %69 = dma.hbm_to_vmem [thread:$0]  %s4, 16, %s67, [#allocation9]
    $region21: #{residual_forward.1} parent=1 // pred_fallthru
      _
    // Predicated region
    $region22: #{residual_forward.1} parent=1 // pred_check
      _
    $region23: #{residual_forward.1} parent=1 // pred_check_branch
      %71 = sbr.rel (0) target = $region25
    $region24: #{residual_forward.1} parent=1 // pred_region
      %72 = dma.done [#allocation3], 256
    $region25: #{residual_forward.1} parent=1 // pred_fallthru
      _
    // Predicated region
    $region26: #{residual_forward.1} parent=1 // pred_check
      _
    $region27: #{residual_forward.1} parent=1 // pred_check_branch
      %74 = sbr.rel (0) target = $region29
    $region28: #{residual_forward.1} parent=1 // pred_region
      %75 = dma.done [#allocation6], 1024
    $region29: #{residual_forward.1} parent=1 // pred_fallthru
      _
    // Predicated region
    $region30: #{residual_forward.1} parent=1 // pred_check
      _
    $region31: #{residual_forward.1} parent=1 // pred_check_branch
      %77 = sbr.rel (0) target = $region33
    $region32: #{residual_forward.1} parent=1 // pred_region
      %78 = dma.done [#allocation6], 16
    $region33: #{residual_forward.1} parent=1 // pred_fallthru
      _
    // Predicated region
    $region34: #{residual_forward.1} parent=1 // pred_check
      _
    $region35: #{residual_forward.1} parent=1 // pred_check_branch
      %80 = sbr.rel (0) target = $region37
    $region36: #{residual_forward.1} parent=1 // pred_region
      %81 = dma.done [#allocation9], 1024
    $region37: #{residual_forward.1} parent=1 // pred_fallthru
      _
    // Predicated region
    $region38: #{residual_forward.1} parent=1 // pred_check
      _
    $region39: #{residual_forward.1} parent=1 // pred_check_branch
      %83 = sbr.rel (0) target = $region41
    $region40: #{residual_forward.1} parent=1 // pred_region
      %84 = dma.done [#allocation9], 16
    $region41: #{residual_forward.1} parent=1 // pred_fallthru
      _
    %v86 = vld [vmem:[#allocation2] sm:$0xff]
    %v87 = vld [vmem:[#allocation2 + $0x8] sm:$0xff]
    %v88 = vmax.f32 %v86, 0.0
    %v89 = vmax.f32 %v87, 0.0
    %vm90 = vcmp.ne.f32.partialorder %v86, %v86
    %vm91 = vcmp.ne.f32.partialorder %v87, %v87
    %v92 = vadd.f32 %v86, 0.0
    %v93 = vadd.f32 %v87, 0.0
    %v94 = vand.u32 2147483647, %v86
    %v95 = vand.u32 2147483647, %v87
    %v96 = vsub.f32 0.0, %v94
    %v97 = vsub.f32 0.0, %v95
    %v98 = vmul.f32 %v96, 1.442695
    %v99 = vpow.pop %v98
    %v100 = vmul.f32 %v97, 1.442695
    %v101 = vpow.pop %v100
    %v102 = vadd.f32 %v99, 1.0
    %v103 = vlog2.pop %v102
    %v104 = vmul.f32 %v103, 0.6931472
    %v105 = vmul.f32 -0.5, %v99
    %v106 = vadd.f32 %v105, 1.0
    %v107 = vmul.f32 %v106, %v99
    %v108 = vand.u32 2147483647, %v99
    %vm109 = vcmp.lt.f32.partialorder %v108, 0.0004427343
    %v110 = vsel %vm109, %v107, %v104
    %v111 = vadd.f32 %v101, 1.0
    %v112 = vlog2.pop %v111
    %v113 = vmul.f32 %v112, 0.6931472
    %v114 = vmul.f32 -0.5, %v101
    %v115 = vadd.f32 %v114, 1.0
    %v116 = vmul.f32 %v115, %v101
    %v117 = vand.u32 2147483647, %v101
    %vm118 = vcmp.lt.f32.partialorder %v117, 0.0004427343
    %v119 = vsel %vm118, %v116, %v113
    %v120 = vadd.f32 %v88, %v110
    %v121 = vadd.f32 %v89, %v119
    %v122 = vsel %vm90, %v92, %v120
    %v123 = vsel %vm91, %v93, %v121
    %v124 = vsub.f32 %v122, 0.6931472
    %v125 = vsub.f32 %v123, 0.6931472
    %v126 = vpack.c.bf16 %v125, %v124
    %v127 = vld [vmem:[#allocation5] sm:$0xf]
    %v128 = vld [vmem:[#allocation5 + $0x4] sm:$0xf]
    %v129 = vld [vmem:[#allocation5 + $0x8] sm:$0xf]
    %v130 = vld [vmem:[#allocation5 + $0xc] sm:$0xf]
    %v131 = vld [vmem:[#allocation5 + $0x10] sm:$0xf]
    %v132 = vld [vmem:[#allocation5 + $0x14] sm:$0xf]
    %v133 = vld [vmem:[#allocation5 + $0x18] sm:$0xf]
    %v134 = vld [vmem:[#allocation5 + $0x1c] sm:$0xf]
    %v135 = vld [vmem:[#allocation5 + $0x20] sm:$0xf]
    %v136 = vld [vmem:[#allocation5 + $0x24] sm:$0xf]
    %v137 = vld [vmem:[#allocation5 + $0x28] sm:$0xf]
    %v138 = vld [vmem:[#allocation5 + $0x2c] sm:$0xf]
    %v139 = vld [vmem:[#allocation5 + $0x30] sm:$0xf]
    %v140 = vld [vmem:[#allocation5 + $0x34] sm:$0xf]
    %v141 = vld [vmem:[#allocation5 + $0x38] sm:$0xf]
    %v142 = vld [vmem:[#allocation5 + $0x3c] sm:$0xf]
    %v143 = vld [vmem:[#allocation7] sm:$0x1]
    %v145 = vlaneseq
    %v146 = vshrl.u32 %v145, 7
    %v147 = vsub.s32 0, %v146
    %v148 = vrot.slane %v143, %v147
    %v166 = vunpack.c.l.b16 %v127
    %v167 = vunpack.c.l.b16 %v128
    %v168 = vunpack.c.l.b16 %v129
    %v169 = vunpack.c.l.b16 %v130
    %v170 = vunpack.c.l.b16 %v131
    %v171 = vunpack.c.l.b16 %v132
    %v172 = vunpack.c.l.b16 %v133
    %v173 = vunpack.c.l.b16 %v134
    %v174 = vunpack.c.l.b16 %v135
    %v175 = vunpack.c.l.b16 %v136
    %v176 = vunpack.c.l.b16 %v137
    %v177 = vunpack.c.l.b16 %v138
    %v178 = vunpack.c.l.b16 %v139
    %v179 = vunpack.c.l.b16 %v140
    %v180 = vunpack.c.l.b16 %v141
    %v181 = vunpack.c.l.b16 %v142
    %v182 = vpack.c.b16 %v167, %v166
    %v183 = vpack.c.b16 %v169, %v168
    %v184 = vpack.c.b16 %v171, %v170
    %v185 = vpack.c.b16 %v173, %v172
    %v186 = vpack.c.b16 %v175, %v174
    %v187 = vpack.c.b16 %v177, %v176
    %v188 = vpack.c.b16 %v179, %v178
    %v189 = vpack.c.b16 %v181, %v180
    %198 = vmatprep.subr.bf16.mxu0 0
    %199 = vmatpush1.bf16.msra.mxu0 %v182
    %200 = vmatprep.subr.bf16.mxu0 0
    %201 = vmatpush1.bf16.msra.mxu0 %v183
    %202 = vmatprep.subr.bf16.mxu0 0
    %203 = vmatpush1.bf16.msra.mxu0 %v184
    %204 = vmatprep.subr.bf16.mxu0 0
    %205 = vmatpush1.bf16.msra.mxu0 %v185
    %206 = vmatprep.subr.bf16.mxu0 0
    %207 = vmatpush1.bf16.msra.mxu0 %v186
    %208 = vmatprep.subr.bf16.mxu0 0
    %209 = vmatpush1.bf16.msra.mxu0 %v187
    %210 = vmatprep.subr.bf16.mxu0 0
    %211 = vmatpush1.bf16.msra.mxu0 %v188
    %212 = vmatprep.subr.bf16.mxu0 0
    %213 = vmatpush1.bf16.msra.mxu0 %v189
    %214 = vmatprep.subr.bf16.mxu0 0
    %215 = vmatpush1.bf16.msra.mxu0 0
    %216 = vmatprep.subr.bf16.mxu0 0
    %217 = vmatpush1.bf16.msra.mxu0 0
    %218 = vmatprep.subr.bf16.mxu0 0
    %219 = vmatpush1.bf16.msra.mxu0 0
    %220 = vmatprep.subr.bf16.mxu0 0
    %221 = vmatpush1.bf16.msra.mxu0 0
    %222 = vmatprep.subr.bf16.mxu0 0
    %223 = vmatpush1.bf16.msra.mxu0 0
    %224 = vmatprep.subr.bf16.mxu0 0
    %225 = vmatpush1.bf16.msra.mxu0 0
    %226 = vmatprep.subr.bf16.mxu0 0
    %227 = vmatpush1.bf16.msra.mxu0 0
    %228 = vmatprep.subr.bf16.mxu0 0
    %229 = vmatpush1.bf16.msra.mxu0 0
    %230 = vmatprep.mubr.bf16.mxu0 0
    %231 = vmatmul.mubr.bf16.gmra.mrb[0].mxu0 %v126
    %v232 = vpop.f32.mrb[0].mxu0
    %v233 = vadd.f32 %v148, %v232
    %v234 = vpop.f32.mrb[0].mxu0
    %v235 = vpop.f32.mrb[0].mxu0
    %v236 = vadd.f32 %v148, %v235
    %v237 = vpop.f32.mrb[0].mxu0
    %238 = vdwg.mxu0
    %v239 = vmax.f32 %v233, 0.0
    %v240 = vmax.f32 %v236, 0.0
    %vm241 = vcmp.ne.f32.partialorder %v233, %v233
    %vm242 = vcmp.ne.f32.partialorder %v236, %v236
    %v243 = vadd.f32 %v233, 0.0
    %v244 = vadd.f32 %v236, 0.0
    %v245 = vand.u32 2147483647, %v233
    %v246 = vand.u32 2147483647, %v236
    %v247 = vsub.f32 0.0, %v245
    %v248 = vsub.f32 0.0, %v246
    %v249 = vmul.f32 %v247, 1.442695
    %v250 = vpow.pop %v249
    %v251 = vmul.f32 %v248, 1.442695
    %v252 = vpow.pop %v251
    %v253 = vadd.f32 %v250, 1.0
    %v254 = vlog2.pop %v253
    %v255 = vmul.f32 %v254, 0.6931472
    %v256 = vmul.f32 -0.5, %v250
    %v257 = vadd.f32 %v256, 1.0
    %v258 = vmul.f32 %v257, %v250
    %v259 = vand.u32 2147483647, %v250
    %vm260 = vcmp.lt.f32.partialorder %v259, 0.0004427343
    %v261 = vsel %vm260, %v258, %v255
    %v262 = vadd.f32 %v252, 1.0
    %v263 = vlog2.pop %v262
    %v264 = vmul.f32 %v263, 0.6931472
    %v265 = vmul.f32 -0.5, %v252
    %v266 = vadd.f32 %v265, 1.0
    %v267 = vmul.f32 %v266, %v252
    %v268 = vand.u32 2147483647, %v252
    %vm269 = vcmp.lt.f32.partialorder %v268, 0.0004427343
    %v270 = vsel %vm269, %v267, %v264
    %v271 = vadd.f32 %v239, %v261
    %v272 = vadd.f32 %v240, %v270
    %v273 = vsel %vm241, %v243, %v271
    %v274 = vsel %vm242, %v244, %v272
    %v275 = vsub.f32 %v273, 0.6931472
    %v276 = vsub.f32 %v274, 0.6931472
    %v277 = vpack.c.bf16 %v276, %v275
    %v278 = vld [vmem:[#allocation8] sm:$0xf]
    %v279 = vld [vmem:[#allocation8 + $0x4] sm:$0xf]
    %v280 = vld [vmem:[#allocation8 + $0x8] sm:$0xf]
    %v281 = vld [vmem:[#allocation8 + $0xc] sm:$0xf]
    %v282 = vld [vmem:[#allocation8 + $0x10] sm:$0xf]
    %v283 = vld [vmem:[#allocation8 + $0x14] sm:$0xf]
    %v284 = vld [vmem:[#allocation8 + $0x18] sm:$0xf]
    %v285 = vld [vmem:[#allocation8 + $0x1c] sm:$0xf]
    %v286 = vld [vmem:[#allocation8 + $0x20] sm:$0xf]
    %v287 = vld [vmem:[#allocation8 + $0x24] sm:$0xf]
    %v288 = vld [vmem:[#allocation8 + $0x28] sm:$0xf]
    %v289 = vld [vmem:[#allocation8 + $0x2c] sm:$0xf]
    %v290 = vld [vmem:[#allocation8 + $0x30] sm:$0xf]
    %v291 = vld [vmem:[#allocation8 + $0x34] sm:$0xf]
    %v292 = vld [vmem:[#allocation8 + $0x38] sm:$0xf]
    %v293 = vld [vmem:[#allocation8 + $0x3c] sm:$0xf]
    %v294 = vld [vmem:[#allocation10] sm:$0x1]
    %v296 = vlaneseq
    %v297 = vshrl.u32 %v296, 7
    %v298 = vsub.s32 0, %v297
    %v299 = vrot.slane %v294, %v298
    %v317 = vunpack.c.l.b16 %v278
    %v318 = vunpack.c.l.b16 %v279
    %v319 = vunpack.c.l.b16 %v280
    %v320 = vunpack.c.l.b16 %v281
    %v321 = vunpack.c.l.b16 %v282
    %v322 = vunpack.c.l.b16 %v283
    %v323 = vunpack.c.l.b16 %v284
    %v324 = vunpack.c.l.b16 %v285
    %v325 = vunpack.c.l.b16 %v286
    %v326 = vunpack.c.l.b16 %v287
    %v327 = vunpack.c.l.b16 %v288
    %v328 = vunpack.c.l.b16 %v289
    %v329 = vunpack.c.l.b16 %v290
    %v330 = vunpack.c.l.b16 %v291
    %v331 = vunpack.c.l.b16 %v292
    %v332 = vunpack.c.l.b16 %v293
    %v333 = vpack.c.b16 %v318, %v317
    %v334 = vpack.c.b16 %v320, %v319
    %v335 = vpack.c.b16 %v322, %v321
    %v336 = vpack.c.b16 %v324, %v323
    %v337 = vpack.c.b16 %v326, %v325
    %v338 = vpack.c.b16 %v328, %v327
    %v339 = vpack.c.b16 %v330, %v329
    %v340 = vpack.c.b16 %v332, %v331
    %349 = vmatprep.subr.bf16.mxu0 0
    %350 = vmatpush1.bf16.msra.mxu0 %v333
    %351 = vmatprep.subr.bf16.mxu0 0
    %352 = vmatpush1.bf16.msra.mxu0 %v334
    %353 = vmatprep.subr.bf16.mxu0 0
    %354 = vmatpush1.bf16.msra.mxu0 %v335
    %355 = vmatprep.subr.bf16.mxu0 0
    %356 = vmatpush1.bf16.msra.mxu0 %v336
    %357 = vmatprep.subr.bf16.mxu0 0
    %358 = vmatpush1.bf16.msra.mxu0 %v337
    %359 = vmatprep.subr.bf16.mxu0 0
    %360 = vmatpush1.bf16.msra.mxu0 %v338
    %361 = vmatprep.subr.bf16.mxu0 0
    %362 = vmatpush1.bf16.msra.mxu0 %v339
    %363 = vmatprep.subr.bf16.mxu0 0
    %364 = vmatpush1.bf16.msra.mxu0 %v340
    %365 = vmatprep.subr.bf16.mxu0 0
    %366 = vmatpush1.bf16.msra.mxu0 0
    %367 = vmatprep.subr.bf16.mxu0 0
    %368 = vmatpush1.bf16.msra.mxu0 0
    %369 = vmatprep.subr.bf16.mxu0 0
    %370 = vmatpush1.bf16.msra.mxu0 0
    %371 = vmatprep.subr.bf16.mxu0 0
    %372 = vmatpush1.bf16.msra.mxu0 0
    %373 = vmatprep.subr.bf16.mxu0 0
    %374 = vmatpush1.bf16.msra.mxu0 0
    %375 = vmatprep.subr.bf16.mxu0 0
    %376 = vmatpush1.bf16.msra.mxu0 0
    %377 = vmatprep.subr.bf16.mxu0 0
    %378 = vmatpush1.bf16.msra.mxu0 0
    %379 = vmatprep.subr.bf16.mxu0 0
    %380 = vmatpush1.bf16.msra.mxu0 0
    %381 = vmatprep.mubr.bf16.mxu0 0
    %382 = vmatmul.mubr.bf16.gmra.mrb[0].mxu0 %v277
    %v383 = vpop.f32.mrb[0].mxu0
    %v384 = vadd.f32 %v299, %v383
    %v385 = vpop.f32.mrb[0].mxu0
    %v386 = vpop.f32.mrb[0].mxu0
    %v387 = vadd.f32 %v299, %v386
    %v388 = vpop.f32.mrb[0].mxu0
    %389 = vdwg.mxu0
    %v390 = vadd.f32 %v86, %v384
    %v391 = vadd.f32 %v87, %v387
    %392 = vst [vmem:[#allocation11] sm:$0xff] %v390
    %393 = vst [vmem:[#allocation11 + $0x8] sm:$0xff] %v391
    // Predicated region
    $region42: #{residual_forward.1} parent=1 // pred_check
      _
    $region43: #{residual_forward.1} parent=1 // pred_check_branch
      %395 = sbr.rel (0) target = $region45
    $region44: #{residual_forward.1} parent=1 // pred_region
      %s397 = ssub.s32 256, 256
      %398 = vsyncadd [#allocation4], %s397
      %s399 = sshll.u32 [#allocation11], 4
      %s400 = int_to_ptr.vmem [resolvable:$true] %s399
      %405 = dma.vmem_to_hbm [thread:$0]  %s400, 256, %s5, [#allocation4], 128, 128, 8
    $region45: #{residual_forward.1} parent=1 // pred_fallthru
      _
    // Predicated region
    $region46: #{residual_forward.1} parent=1 // pred_check
      _
    $region47: #{residual_forward.1} parent=1 // pred_check_branch
      %407 = sbr.rel (0) target = $region49
    $region48: #{residual_forward.1} parent=1 // pred_region
      %408 = dma.done [#allocation4], 256
    $region49: #{residual_forward.1} parent=1 // pred_fallthru
      _
    %409 = vsyncpa [#allocation3], 1
    %410 = vsyncpa [#allocation6], 1
    %411 = vsyncpa [#allocation9], 1
    %412 = vsyncpa [#allocation4], 1

</llo_original>
